<compile_context>
chip_gen: v7x
topology: tpu7x:2x2x1
jax: 0.10.0
libtpu: 0.0.40
codegen_flags: <defaults>
</compile_context>

<pallas_src>
import functools
import math

import jax
import jax.numpy as jnp
from jax import lax
from jax.experimental import pallas as pl
from jax.experimental.pallas import tpu as pltpu


# ----------------------------- tiling helpers -------------------------------

DEF_TM = 256        # row tile for matmul-style kernels
DEF_TN = 512        # output-column tile
DEF_TH = 1024       # MLP hidden (4C) reduction tile
DEF_TM_HEAD = 512   # row tile for the lm_head (amortize wte_T re-streaming)
DEF_TV = 1024       # vocab tile for lm_head
DEF_TQ = 256        # attention query tile
DEF_TKV = 512       # attention kv tile (inner loop)


def _vmem_limit_bytes():
    """~75% of the chip's physical VMEM (leaves headroom on v7x's 64 MiB),
    capped so we never ask for more than is useful for these tiles."""
    try:
        cap = pltpu.get_tpu_info().vmem_capacity_bytes
    except Exception:
        cap = 64 * 1024 * 1024
    return min(int(cap * 0.75), 100 * 1024 * 1024)


VMEM_LIMIT = _vmem_limit_bytes()


def _tile(dim, target, mult):
    """Largest t <= target with t % mult == 0 and dim % t == 0, else full dim."""
    if dim <= target:
        return dim
    t = (min(target, dim) // mult) * mult
    while t >= mult:
        if dim % t == 0:
            return t
        t -= mult
    return dim


def _cp(dims):
    return pltpu.CompilerParams(dimension_semantics=dims,
                                vmem_limit_bytes=VMEM_LIMIT)


def _layernorm_f32(x_ref, g_ref, b_ref):
    """LayerNorm of a (tm, C) tile in f32 (eps=1e-5, biased variance)."""
    xf = x_ref[...].astype(jnp.float32)
    mu = jnp.mean(xf, axis=-1, keepdims=True)
    var = jnp.mean(jnp.square(xf - mu), axis=-1, keepdims=True)
    return (xf - mu) * lax.rsqrt(var + 1e-5) * g_ref[...] + b_ref[...]


# ----------------------------- Pallas kernels -------------------------------

def _ln_linear_kernel(x_ref, g_ref, be_ref, w_ref, b_ref, o_ref, xn_sc):
    """Fused LayerNorm -> Linear(+bias).  Grid (M/tm, N/tn); LN cached in
    VMEM scratch at j==0 (column axis is 'arbitrary')."""
    @pl.when(pl.program_id(1) == 0)
    def _():
        xn_sc[...] = _layernorm_f32(x_ref, g_ref, be_ref).astype(xn_sc.dtype)

    acc = jnp.dot(xn_sc[...], w_ref[...], preferred_element_type=jnp.float32)
    o_ref[...] = (acc + b_ref[...]).astype(o_ref.dtype)


def _linear_kernel(x_ref, w_ref, b_ref, o_ref):
    """Plain Linear(+bias), full-depth contraction per step."""
    acc = jnp.dot(x_ref[...], w_ref[...], preferred_element_type=jnp.float32)
    o_ref[...] = (acc + b_ref[...]).astype(o_ref.dtype)


def _ln_mlp_kernel(x_ref, g_ref, be_ref, w1_ref, b1_ref, w2_ref, b2_ref,
                   o_ref, xn_sc, acc_sc):
    """Fused ln_2 -> c_fc -> GELU(tanh) -> c_proj.

    Grid (M/tm, 4C/th); the hidden dim is the trailing reduction axis so the
    4C activation never leaves VMEM.  LN computed once at k==0.
    """
    k = pl.program_id(1)

    @pl.when(k == 0)
    def _():
        xn_sc[...] = _layernorm_f32(x_ref, g_ref, be_ref).astype(xn_sc.dtype)
        acc_sc[...] = jnp.zeros(acc_sc.shape, acc_sc.dtype)

    h = jnp.dot(xn_sc[...], w1_ref[...],
                preferred_element_type=jnp.float32) + b1_ref[...]
    c = 0.7978845608028654  # sqrt(2/pi)
    g = 0.5 * h * (1.0 + jnp.tanh(c * (h + 0.044715 * h * h * h)))
    acc_sc[...] += jnp.dot(g.astype(w2_ref.dtype), w2_ref[...],
                           preferred_element_type=jnp.float32)

    @pl.when(k == pl.num_programs(1) - 1)
    def _():
        o_ref[...] = (acc_sc[...] + b2_ref[...]).astype(o_ref.dtype)


def _flash_attn_kernel(q_ref, k_ref, v_ref, o_ref, *, scale, hb, hd, tq, tkv):
    """Causal flash attention for one (batch, head-group, q-tile).

    q_ref: (tq, hb*hd), k_ref/v_ref: (T, hb*hd) -- full kv resident (its DMA
    is elided across q tiles since the block index is qi-independent).
    The kv sweep runs inside the kernel: an unmasked fori_loop over fully
    visible kv blocks followed by a masked loop over blocks touching the
    causal diagonal; blocks above the diagonal are never visited.
    Output is written in merged-head (B, T, C) layout.
    """
    qi = pl.program_id(2)
    q_start = qi * tq
    num_full = q_start // tkv                      # fully-unmasked kv blocks
    num_kv = (q_start + tq + tkv - 1) // tkv       # kv blocks up to diagonal
    row_ids = q_start + lax.broadcasted_iota(jnp.int32, (tq, tkv), 0)
    col_iota = lax.broadcasted_iota(jnp.int32, (tq, tkv), 1)

    for h in range(hb):                            # static unroll over heads
        c0 = h * hd
        # fold 1/sqrt(hd) into q once (not per kv block)
        q_h = (q_ref[:, c0:c0 + hd].astype(jnp.float32) * scale
               ).astype(jnp.bfloat16)

        def kv_step(j, carry, masked):
            m_prev, l_prev, acc_prev = carry
            start = pl.multiple_of(j * tkv, tkv)
            k_blk = k_ref[pl.ds(start, tkv), c0:c0 + hd]       # (tkv, hd)
            v_blk = v_ref[pl.ds(start, tkv), c0:c0 + hd]       # (tkv, hd)
            s = lax.dot_general(q_h, k_blk, (((1,), (1,)), ((), ())),
                                preferred_element_type=jnp.float32)
            if masked:
                s = jnp.where(start + col_iota <= row_ids, s, -1e30)
            m_new = jnp.maximum(m_prev, jnp.max(s, axis=-1, keepdims=True))
            alpha = jnp.exp(m_prev - m_new)
            p = jnp.exp(s - m_new)
            l_new = alpha * l_prev + jnp.sum(p, axis=-1, keepdims=True)
            acc_new = alpha * acc_prev + jnp.dot(
                p.astype(v_blk.dtype), v_blk,
                preferred_element_type=jnp.float32)
            return m_new, l_new, acc_new

        carry = (jnp.full((tq, 1), -1e30, jnp.float32),
                 jnp.zeros((tq, 1), jnp.float32),
                 jnp.zeros((tq, hd), jnp.float32))
        carry = lax.fori_loop(0, num_full,
                              lambda j, c: kv_step(j, c, False), carry)
        _, l, acc = lax.fori_loop(num_full, num_kv,
                                  lambda j, c: kv_step(j, c, True), carry)
        inv_l = pl.reciprocal(l, approx=True)
        o_ref[:, c0:c0 + hd] = (acc * inv_l).astype(o_ref.dtype)


def _ln_lm_head_kernel(x_ref, g_ref, be_ref, wt_ref, o_ref, xn_sc):
    """Fused ln_f -> lm_head against pre-transposed wte_T (C, V_pad).
    LN cached in VMEM scratch at j==0 (vocab axis is 'arbitrary')."""
    @pl.when(pl.program_id(1) == 0)
    def _():
        xn_sc[...] = _layernorm_f32(x_ref, g_ref, be_ref).astype(xn_sc.dtype)

    o_ref[...] = jnp.dot(xn_sc[...], wt_ref[...],
                         preferred_element_type=jnp.float32
                         ).astype(o_ref.dtype)


# ----------------------------- wrappers --------------------------------------

def ln_linear(x2d, g, b, w, bias):
    N, C = x2d.shape
    Dout = w.shape[1]
    tm = _tile(N, DEF_TM, 8)
    tn = _tile(Dout, DEF_TN, 128)
    return pl.pallas_call(
        _ln_linear_kernel,
        out_shape=jax.ShapeDtypeStruct((N, Dout), jnp.bfloat16),
        grid=(N // tm, Dout // tn),
        in_specs=[pl.BlockSpec((tm, C), lambda i, j: (i, 0)),
                  pl.BlockSpec((1, C), lambda i, j: (0, 0)),
                  pl.BlockSpec((1, C), lambda i, j: (0, 0)),
                  pl.BlockSpec((C, tn), lambda i, j: (0, j)),
                  pl.BlockSpec((1, tn), lambda i, j: (0, j))],
        out_specs=pl.BlockSpec((tm, tn), lambda i, j: (i, j)),
        scratch_shapes=[pltpu.VMEM((tm, C), jnp.bfloat16)],
        compiler_params=_cp(("parallel", "arbitrary")),
    )(x2d, g.reshape(1, -1), b.reshape(1, -1), w, bias.reshape(1, -1))


def linear(x2d, w, bias):
    N, K = x2d.shape
    Dout = w.shape[1]
    tm = _tile(N, DEF_TM, 8)
    tn = _tile(Dout, DEF_TN, 128)
    return pl.pallas_call(
        _linear_kernel,
        out_shape=jax.ShapeDtypeStruct((N, Dout), jnp.bfloat16),
        grid=(N // tm, Dout // tn),
        in_specs=[pl.BlockSpec((tm, K), lambda i, j: (i, 0)),
                  pl.BlockSpec((K, tn), lambda i, j: (0, j)),
                  pl.BlockSpec((1, tn), lambda i, j: (0, j))],
        out_specs=pl.BlockSpec((tm, tn), lambda i, j: (i, j)),
        compiler_params=_cp(("parallel", "parallel")),
    )(x2d, w, bias.reshape(1, -1))


def ln_mlp(x2d, g, b, w1, b1, w2, b2):
    N, C = x2d.shape
    H4 = w1.shape[1]
    tm = _tile(N, DEF_TM, 8)
    th = _tile(H4, DEF_TH, 128)
    return pl.pallas_call(
        _ln_mlp_kernel,
        out_shape=jax.ShapeDtypeStruct((N, C), jnp.bfloat16),
        grid=(N // tm, H4 // th),
        in_specs=[pl.BlockSpec((tm, C), lambda i, k: (i, 0)),
                  pl.BlockSpec((1, C), lambda i, k: (0, 0)),
                  pl.BlockSpec((1, C), lambda i, k: (0, 0)),
                  pl.BlockSpec((C, th), lambda i, k: (0, k)),
                  pl.BlockSpec((1, th), lambda i, k: (0, k)),
                  pl.BlockSpec((th, C), lambda i, k: (k, 0)),
                  pl.BlockSpec((1, C), lambda i, k: (0, 0))],
        out_specs=pl.BlockSpec((tm, C), lambda i, k: (i, 0)),
        scratch_shapes=[pltpu.VMEM((tm, C), jnp.bfloat16),
                        pltpu.VMEM((tm, C), jnp.float32)],
        compiler_params=_cp(("parallel", "arbitrary")),
    )(x2d, g.reshape(1, -1), b.reshape(1, -1),
      w1, b1.reshape(1, -1), w2, b2.reshape(1, -1))


def flash_attention(qkv3, *, n_head):
    """qkv3: (B, T, 3C) bf16, columns [q | k | v] with heads contiguous
    inside each.  Returns attention output in merged-head layout (B, T, C)."""
    B, T, threeC = qkv3.shape
    C = threeC // 3
    hd = C // n_head
    # heads per group: widest group <= 128 lanes that divides n_head
    hb = min(n_head, max(1, 128 // hd))
    while n_head % hb != 0:
        hb -= 1
    gw = hb * hd                    # group lane width (128 at GPT-2 scale)
    hg = n_head // hb               # number of head groups
    tq = _tile(T, DEF_TQ, 8)
    tkv = _tile(T, DEF_TKV, 8)
    scale = 1.0 / math.sqrt(hd)
    kernel = functools.partial(_flash_attn_kernel, scale=scale,
                               hb=hb, hd=hd, tq=tq, tkv=tkv)
    return pl.pallas_call(
        kernel,
        out_shape=jax.ShapeDtypeStruct((B, T, C), jnp.bfloat16),
        grid=(B, hg, T // tq),
        in_specs=[
            # q tile for this head group (column block of the qkv output)
            pl.BlockSpec((None, tq, gw), lambda b, g, qi: (b, qi, g)),
            # full-T k / v for this head group; block index is independent of
            # qi, so the DMA is issued once per (b, g) and elided afterwards.
            pl.BlockSpec((None, T, gw), lambda b, g, qi: (b, 0, hg + g)),
            pl.BlockSpec((None, T, gw), lambda b, g, qi: (b, 0, 2 * hg + g)),
        ],
        out_specs=pl.BlockSpec((None, tq, gw), lambda b, g, qi: (b, qi, g)),
        compiler_params=_cp(("parallel", "parallel", "parallel")),
    )(qkv3, qkv3, qkv3)


def ln_lm_head(x2d, g, b, wte_t):
    N, C = x2d.shape
    V = wte_t.shape[1]
    tm = _tile(N, DEF_TM_HEAD, 8)
    tv = _tile(V, DEF_TV, 128)
    return pl.pallas_call(
        _ln_lm_head_kernel,
        out_shape=jax.ShapeDtypeStruct((N, V), jnp.float32),
        grid=(N // tm, V // tv),
        in_specs=[pl.BlockSpec((tm, C), lambda i, j: (i, 0)),
                  pl.BlockSpec((1, C), lambda i, j: (0, 0)),
                  pl.BlockSpec((1, C), lambda i, j: (0, 0)),
                  pl.BlockSpec((C, tv), lambda i, j: (0, j))],
        out_specs=pl.BlockSpec((tm, tv), lambda i, j: (i, j)),
        scratch_shapes=[pltpu.VMEM((tm, C), jnp.bfloat16)],
        compiler_params=_cp(("parallel", "arbitrary")),
    )(x2d, g.reshape(1, -1), b.reshape(1, -1), wte_t)


# ----------------------------- model ----------------------------------------

def init_params(key, *, vocab_size, block_size, n_layer, n_embd, n_head):
    std = 0.02
    proj_std = 0.02 * (2 * n_layer) ** -0.5      # NANOGPT_SCALE_INIT
    v_pad = ((vocab_size + 127) // 128) * 128    # pad vocab for clean tiling
    keys = iter(jax.random.split(key, 2 + 4 * n_layer))

    def wmat(shape, s):
        return (jax.random.normal(next(keys), shape, jnp.float32) * s
                ).astype(jnp.bfloat16)

    wte_f32 = jax.random.normal(next(keys), (vocab_size, n_embd),
                                jnp.float32) * std
    wte_f32 = jnp.pad(wte_f32, ((0, v_pad - vocab_size), (0, 0)))
    params = {
        'wte': wte_f32.astype(jnp.bfloat16),          # embedding gather
        'wte_T': wte_f32.T.astype(jnp.bfloat16),      # tied lm_head (C, V_pad)
        'wpe': wmat((block_size, n_embd), std),
        'lnf_g': jnp.ones((n_embd,), jnp.float32),
        'lnf_b': jnp.zeros((n_embd,), jnp.float32),
        'blocks': [],
    }
    for _ in range(n_layer):
        params['blocks'].append({
            'ln1_g': jnp.ones((n_embd,), jnp.float32),
            'ln1_b': jnp.zeros((n_embd,), jnp.float32),
            'attn_w': wmat((n_embd, 3 * n_embd), std),
            'attn_b': jnp.zeros((3 * n_embd,), jnp.float32),
            'proj_w': wmat((n_embd, n_embd), proj_std),
            'proj_b': jnp.zeros((n_embd,), jnp.float32),
            'ln2_g': jnp.ones((n_embd,), jnp.float32),
            'ln2_b': jnp.zeros((n_embd,), jnp.float32),
            'fc_w': wmat((n_embd, 4 * n_embd), std),
            'fc_b': jnp.zeros((4 * n_embd,), jnp.float32),
            'mlp_proj_w': wmat((4 * n_embd, n_embd), proj_std),
            'mlp_proj_b': jnp.zeros((n_embd,), jnp.float32),
        })
    return params


def gpt_forward(idx, params, *, n_head, vocab_size):
    B, T = idx.shape
    C = params['wpe'].shape[1]

    # Token/position embedding gather + add: plain-XLA glue (irregular gather).
    tok = jnp.take(params['wte'], idx, axis=0)          # (B, T, C) bf16
    pos = params['wpe'][:T]                              # (T, C) bf16
    x = (tok + pos[None, :, :]).astype(jnp.bfloat16)

    for lp in params['blocks']:
        # --- attention sub-block: x = c_proj(attn(ln_1(x)))  (no residual)
        qkv = ln_linear(x.reshape(B * T, C), lp['ln1_g'], lp['ln1_b'],
                        lp['attn_w'], lp['attn_b'])      # (B*T, 3C) bf16
        y = flash_attention(qkv.reshape(B, T, 3 * C),
                            n_head=n_head)               # (B, T, C) bf16
        x = linear(y.reshape(B * T, C), lp['proj_w'],
                   lp['proj_b']).reshape(B, T, C)

        # --- mlp sub-block: x = mlp(ln_2(x))  (no residual)
        x = ln_mlp(x.reshape(B * T, C), lp['ln2_g'], lp['ln2_b'],
                   lp['fc_w'], lp['fc_b'],
                   lp['mlp_proj_w'], lp['mlp_proj_b']).reshape(B, T, C)

    logits = ln_lm_head(x.reshape(B * T, C), params['lnf_g'], params['lnf_b'],
                        params['wte_T'])                  # (B*T, V_pad) f32
    logits = logits[:, :vocab_size].reshape(B, T, vocab_size)
    loss = None  # targets=None path of the reference forward
    return logits, loss


# ----------------------------- main ------------------------------------------

if __name__ == "__main__":
    # small, self-consistent config (dims chosen so head-group width = 128)
    vocab_size = 256
    block_size = 32
    n_layer = 2
    n_embd = 128
    n_head = 4
    B, T = 2, 16

    key = jax.random.PRNGKey(0)
    pkey, ikey = jax.random.split(key)
    params = init_params(pkey, vocab_size=vocab_size, block_size=block_size,
                         n_layer=n_layer, n_embd=n_embd, n_head=n_head)
    idx = jax.random.randint(ikey, (B, T), 0, vocab_size, dtype=jnp.int32)

    logits, loss = gpt_forward(idx, params, n_head=n_head,
                               vocab_size=vocab_size)
    logits = jax.block_until_ready(logits)
    assert logits.shape == (B, T, vocab_size)
    assert loss is None
    assert bool(jnp.all(jnp.isfinite(logits)))
    print("KERNEL_OK")
</pallas_src>

<mosaic_0001>
module attributes {stable_mosaic.version = 11 : i64} {
  func.func @_ln_linear_kernel(%arg0: i32, %arg1: i32, %arg2: memref<32x128xbf16, #tpu.memory_space<vmem>>, %arg3: memref<1x128xf32, #tpu.memory_space<vmem>>, %arg4: memref<1x128xf32, #tpu.memory_space<vmem>>, %arg5: memref<128x384xbf16, #tpu.memory_space<vmem>>, %arg6: memref<1x384xf32, #tpu.memory_space<vmem>>, %arg7: memref<32x384xbf16, #tpu.memory_space<vmem>>, %arg8: memref<32x128xbf16, #tpu.memory_space<vmem>>) attributes {dimension_semantics = [#tpu.dimension_semantics<parallel>, #tpu.dimension_semantics<arbitrary>], iteration_bounds = array<i64: 1, 1>, scalar_prefetch = 0 : i64, scratch_operands = 1 : i64, tpu.core_type = #tpu.core_type<tc>, window_params = [{transform_indices = @transform_0, window_bounds = array<i64: 32, 128>}, {pipeline_mode = #tpu.pipeline_mode<synchronous>, transform_indices = @transform_1, window_bounds = array<i64: 1, 128>}, {pipeline_mode = #tpu.pipeline_mode<synchronous>, transform_indices = @transform_2, window_bounds = array<i64: 1, 128>}, {transform_indices = @transform_3, window_bounds = array<i64: 128, 384>}, {transform_indices = @transform_4, window_bounds = array<i64: 1, 384>}, {transform_indices = @transform_5, window_bounds = array<i64: 32, 384>}]} {
    %c0_i32 = arith.constant 0 : i32
    %0 = arith.cmpi eq, %arg1, %c0_i32 : i32
    %1 = arith.extui %0 : i1 to i32
    %c0_i32_0 = arith.constant 0 : i32
    %2 = arith.cmpi ne, %1, %c0_i32_0 : i32
    scf.if %2 {
      %c0_8 = arith.constant 0 : index
      %c0_9 = arith.constant 0 : index
      %11 = vector.load %arg2[%c0_8, %c0_9] : memref<32x128xbf16, #tpu.memory_space<vmem>>, vector<32x128xbf16>
      %12 = arith.extf %11 : vector<32x128xbf16> to vector<32x128xf32>
      %cst_10 = arith.constant dense<0.000000e+00> : vector<32xf32>
      %13 = vector.multi_reduction <add>, %12, %cst_10 [1] : vector<32x128xf32> to vector<32xf32>
      %14 = vector.shape_cast %13 : vector<32xf32> to vector<32x1xf32>
      %cst_11 = arith.constant 1.280000e+02 : f32
      %15 = vector.broadcast %cst_11 : f32 to vector<32x1xf32>
      %16 = arith.divf %14, %15 : vector<32x1xf32>
      %17 = vector.broadcast %16 : vector<32x1xf32> to vector<32x128xf32>
      %18 = arith.subf %12, %17 : vector<32x128xf32>
      %19 = arith.mulf %18, %18 : vector<32x128xf32>
      %cst_12 = arith.constant dense<0.000000e+00> : vector<32xf32>
      %20 = vector.multi_reduction <add>, %19, %cst_12 [1] : vector<32x128xf32> to vector<32xf32>
      %21 = vector.shape_cast %20 : vector<32xf32> to vector<32x1xf32>
      %cst_13 = arith.constant 1.280000e+02 : f32
      %22 = vector.broadcast %cst_13 : f32 to vector<32x1xf32>
      %23 = arith.divf %21, %22 : vector<32x1xf32>
      %24 = vector.broadcast %16 : vector<32x1xf32> to vector<32x128xf32>
      %25 = arith.subf %12, %24 : vector<32x128xf32>
      %cst_14 = arith.constant 9.99999974E-6 : f32
      %26 = vector.broadcast %cst_14 : f32 to vector<32x1xf32>
      %27 = arith.addf %23, %26 : vector<32x1xf32>
      %28 = math.rsqrt %27 : vector<32x1xf32>
      %29 = vector.broadcast %28 : vector<32x1xf32> to vector<32x128xf32>
      %30 = arith.mulf %25, %29 : vector<32x128xf32>
      %c0_15 = arith.constant 0 : index
      %c0_16 = arith.constant 0 : index
      %31 = vector.load %arg3[%c0_15, %c0_16] : memref<1x128xf32, #tpu.memory_space<vmem>>, vector<1x128xf32>
      %32 = vector.broadcast %31 : vector<1x128xf32> to vector<32x128xf32>
      %33 = arith.mulf %30, %32 : vector<32x128xf32>
      %c0_17 = arith.constant 0 : index
      %c0_18 = arith.constant 0 : index
      %34 = vector.load %arg4[%c0_17, %c0_18] : memref<1x128xf32, #tpu.memory_space<vmem>>, vector<1x128xf32>
      %35 = vector.broadcast %34 : vector<1x128xf32> to vector<32x128xf32>
      %36 = arith.addf %33, %35 : vector<32x128xf32>
      %37 = arith.truncf %36 : vector<32x128xf32> to vector<32x128xbf16>
      %c0_19 = arith.constant 0 : index
      %c0_20 = arith.constant 0 : index
      %38 = vector.load %arg8[%c0_19, %c0_20] : memref<32x128xbf16, #tpu.memory_space<vmem>>, vector<32x128xbf16>
      tpu.vector_store %arg8[%c0_19, %c0_20], %37 {strides = array<i32>} : memref<32x128xbf16, #tpu.memory_space<vmem>>, vector<32x128xbf16>,
    } else {
    }
    %c0 = arith.constant 0 : index
    %c0_1 = arith.constant 0 : index
    %3 = vector.load %arg8[%c0, %c0_1] : memref<32x128xbf16, #tpu.memory_space<vmem>>, vector<32x128xbf16>
    %c0_2 = arith.constant 0 : index
    %c0_3 = arith.constant 0 : index
    %4 = vector.load %arg5[%c0_2, %c0_3] : memref<128x384xbf16, #tpu.memory_space<vmem>>, vector<128x384xbf16>
    %cst = arith.constant dense<0.000000e+00> : vector<32x384xf32>
    %5 = tpu.matmul %3, %4, %cst {dimension_numbers = #tpu.dot_dimension_numbers<[1], [0], [0], [1], [0, 0, 1, 1], [], []>} : vector<32x128xbf16>, vector<128x384xbf16>, vector<32x384xf32> -> vector<32x384xf32>
    %c0_4 = arith.constant 0 : index
    %c0_5 = arith.constant 0 : index
    %6 = vector.load %arg6[%c0_4, %c0_5] : memref<1x384xf32, #tpu.memory_space<vmem>>, vector<1x384xf32>
    %7 = vector.broadcast %6 : vector<1x384xf32> to vector<32x384xf32>
    %8 = arith.addf %5, %7 : vector<32x384xf32>
    %9 = arith.truncf %8 : vector<32x384xf32> to vector<32x384xbf16>
    %c0_6 = arith.constant 0 : index
    %c0_7 = arith.constant 0 : index
    %10 = vector.load %arg7[%c0_6, %c0_7] : memref<32x384xbf16, #tpu.memory_space<vmem>>, vector<32x384xbf16>
    tpu.vector_store %arg7[%c0_6, %c0_7], %9 {strides = array<i32>} : memref<32x384xbf16, #tpu.memory_space<vmem>>, vector<32x384xbf16>,
    return
  }
  func.func @transform_0(%arg0: i32, %arg1: i32) -> (i32, i32) {
    %c0_i32 = arith.constant 0 : i32
    %c0_i32_0 = arith.constant 0 : i32
    return %arg0, %c0_i32 : i32, i32
  }
  func.func @transform_1(%arg0: i32, %arg1: i32) -> (i32, i32) {
    %c0_i32 = arith.constant 0 : i32
    %c0_i32_0 = arith.constant 0 : i32
    %c0_i32_1 = arith.constant 0 : i32
    return %c0_i32, %c0_i32_0 : i32, i32
  }
  func.func @transform_2(%arg0: i32, %arg1: i32) -> (i32, i32) {
    %c0_i32 = arith.constant 0 : i32
    %c0_i32_0 = arith.constant 0 : i32
    %c0_i32_1 = arith.constant 0 : i32
    return %c0_i32, %c0_i32_0 : i32, i32
  }
  func.func @transform_3(%arg0: i32, %arg1: i32) -> (i32, i32) {
    %c0_i32 = arith.constant 0 : i32
    %c0_i32_0 = arith.constant 0 : i32
    return %c0_i32, %arg1 : i32, i32
  }
  func.func @transform_4(%arg0: i32, %arg1: i32) -> (i32, i32) {
    %c0_i32 = arith.constant 0 : i32
    %c0_i32_0 = arith.constant 0 : i32
    return %c0_i32, %arg1 : i32, i32
  }
  func.func @transform_5(%arg0: i32, %arg1: i32) -> (i32, i32) {
    %c0_i32 = arith.constant 0 : i32
    return %arg0, %arg1 : i32, i32
  }
}

</mosaic_0001>

<llo_original>
// kernel: tpu_custom_call.1
$region0: #{tpu_custom_call.1}
  #allocation0 [shape = 'u32[]', space=smem, size = 0x4, offset = 0x4, fixed_abs, tag = 'smem constant byte address 0x4 - core index']
  #allocation1 [shape = 'u32[144,128]{1,0:T(1,128)}', space=vmem, size = 0x12000, scoped, tag = 'internal scratch']
  #allocation2 [shape = 'bf16[32,128]{1,0:T(16,128)(2,1)}', space=vmem, size = 0x2000, scoped, tag = 'scratch operand']
  %s0 = inlined_call_operand.hbm [shape: bf16[32,128], index: 0, kind: input, shape index: {}]
  %s1 = inlined_call_operand.vmem [shape: f32[1,128], index: 1, kind: input, shape index: {}]
  %s2 = inlined_call_operand.vmem [shape: f32[1,128], index: 2, kind: input, shape index: {}]
  %s3 = inlined_call_operand.hbm [shape: bf16[128,384], index: 3, kind: input, shape index: {}]
  %s4 = inlined_call_operand.vmem [shape: f32[1,384], index: 4, kind: input, shape index: {}]
  %s5 = inlined_call_operand.hbm [shape: bf16[32,384], index: 5, kind: output, shape index: {}]
  %s6 = sld [smem:[#allocation0]]
  $region42: #{tpu_custom_call.1} parent=0
    _
  %s8 = ssub.s32 1, %s6
  %s9 = scalar_select 0, %s8, %s6
  $region1: #{tpu_custom_call.1} parent=0
    #allocation3 [shape = 'u8[8192]{0}', space=vmem, size = 0x2000, scoped, tag = 'input window, operand 0, single buffered']
    #allocation4 [shape = 's32[1]{0}', space=sflag, size = 0x4, scoped, tag = 'scoped memory for tpu_custom_call.1']
    #allocation5 [shape = 's32[1]{0}', space=sflag, size = 0x4, scoped, tag = 'scoped memory for tpu_custom_call.1']
    #allocation6 [shape = 'u8[98304]{0}', space=vmem, size = 0x18000, scoped, tag = 'input window, operand 3, single buffered']
    #allocation7 [shape = 's32[1]{0}', space=sflag, size = 0x4, scoped, tag = 'scoped memory for tpu_custom_call.1']
    #allocation8 [shape = 'u8[24576]{0}', space=vmem, size = 0x6000, scoped, tag = 'output window, operand 0, single buffered']
    %10 = vsyncpa [#allocation4], 0
    %11 = vsyncpa [#allocation7], 0
    %12 = vsyncpa [#allocation5], 0
    // Predicated region
    $region2: #{tpu_custom_call.1} parent=1 // pred_check
      _
    $region3: #{tpu_custom_call.1} parent=1 // pred_check_branch
      %14 = sbr.rel (0) target = $region5
    $region4: #{tpu_custom_call.1} parent=1 // pred_region
      %s16 = ssub.s32 256, 256
      %17 = vsyncadd [#allocation4], %s16
      %s18 = sshll.u32 [#allocation3], 4
      %s19 = int_to_ptr.vmem [resolvable:$true] %s18
      %24 = dma.hbm_to_vmem [thread:$0]  %s0, 256, %s19, [#allocation4], 64, 64, 4
    $region5: #{tpu_custom_call.1} parent=1 // pred_fallthru
      _
    // Predicated region
    $region6: #{tpu_custom_call.1} parent=1 // pred_check
      _
    $region7: #{tpu_custom_call.1} parent=1 // pred_check_branch
      %26 = sbr.rel (0) target = $region9
    $region8: #{tpu_custom_call.1} parent=1 // pred_region
      _
    $region9: #{tpu_custom_call.1} parent=1 // pred_fallthru
      _
    // Predicated region
    $region10: #{tpu_custom_call.1} parent=1 // pred_check
      _
    $region11: #{tpu_custom_call.1} parent=1 // pred_check_branch
      %28 = sbr.rel (0) target = $region13
    $region12: #{tpu_custom_call.1} parent=1 // pred_region
      _
    $region13: #{tpu_custom_call.1} parent=1 // pred_fallthru
      _
    // Predicated region
    $region14: #{tpu_custom_call.1} parent=1 // pred_check
      _
    $region15: #{tpu_custom_call.1} parent=1 // pred_check_branch
      %30 = sbr.rel (0) target = $region17
    $region16: #{tpu_custom_call.1} parent=1 // pred_region
      %s32 = ssub.s32 3072, 3072
      %33 = vsyncadd [#allocation7], %s32
      %s34 = sshll.u32 [#allocation6], 4
      %s35 = int_to_ptr.vmem [resolvable:$true] %s34
      %40 = dma.hbm_to_vmem [thread:$0]  %s3, 3072, %s35, [#allocation7], 192, 192, 12
    $region17: #{tpu_custom_call.1} parent=1 // pred_fallthru
      _
    // Predicated region
    $region18: #{tpu_custom_call.1} parent=1 // pred_check
      _
    $region19: #{tpu_custom_call.1} parent=1 // pred_check_branch
      %42 = sbr.rel (0) target = $region21
    $region20: #{tpu_custom_call.1} parent=1 // pred_region
      _
    $region21: #{tpu_custom_call.1} parent=1 // pred_fallthru
      _
    // Predicated region
    $region22: #{tpu_custom_call.1} parent=1 // pred_check
      _
    $region23: #{tpu_custom_call.1} parent=1 // pred_check_branch
      %44 = sbr.rel (0) target = $region25
    $region24: #{tpu_custom_call.1} parent=1 // pred_region
      %45 = dma.done [#allocation4], 256
    $region25: #{tpu_custom_call.1} parent=1 // pred_fallthru
      _
    // Predicated region
    $region26: #{tpu_custom_call.1} parent=1 // pred_check
      _
    $region27: #{tpu_custom_call.1} parent=1 // pred_check_branch
      %47 = sbr.rel (0) target = $region29
    $region28: #{tpu_custom_call.1} parent=1 // pred_region
      %48 = dma.done [#allocation7], 3072
    $region29: #{tpu_custom_call.1} parent=1 // pred_fallthru
      _
    %p50 = scmp.eq.s32.totalorder 0, 0
    // Predicated region
    $region30: #{tpu_custom_call.1} parent=1 // pred_check
      %p51 = pneg %p50
    $region31: #{tpu_custom_call.1} parent=1 // pred_check_branch
      %53 = sbr.rel (%p51) target = $region33
    $region32: #{tpu_custom_call.1} parent=1 // pred_region
      %v54 = vld [vmem:[#allocation3] sm:$0xf]
      %v55 = vld [vmem:[#allocation3 + $0x4] sm:$0xf]
      %v56 = vld [vmem:[#allocation3 + $0x8] sm:$0xf]
      %v57 = vld [vmem:[#allocation3 + $0xc] sm:$0xf]
      %v58 = vunpack.c.l.bf16 %v54
      %v59 = vunpack.c.l.bf16 %v55
      %v60 = vunpack.c.l.bf16 %v56
      %v61 = vunpack.c.l.bf16 %v57
      %62 = vadd.xlane.f32.xlu0 %v58
      %v63 = vpop.xlane.xlu0 %62
      %64 = vadd.xlane.f32.xlu0 %v59
      %v65 = vpop.xlane.xlu0 %64
      %66 = vadd.xlane.f32.xlu0 %v60
      %v67 = vpop.xlane.xlu0 %66
      %68 = vadd.xlane.f32.xlu0 %v61
      %v69 = vpop.xlane.xlu0 %68
      %v70 = vrcp.pop 128.0
      %v71 = vmul.f32 %v63, %v70
      %v72 = vmul.f32 %v65, %v70
      %v73 = vmul.f32 %v67, %v70
      %v74 = vmul.f32 %v69, %v70
      %v75 = vsub.f32 %v58, %v71
      %v76 = vsub.f32 %v59, %v72
      %v77 = vsub.f32 %v60, %v73
      %v78 = vsub.f32 %v61, %v74
      %v79 = vmul.f32 %v75, %v75
      %v80 = vmul.f32 %v76, %v76
      %v81 = vmul.f32 %v77, %v77
      %v82 = vmul.f32 %v78, %v78
      %83 = vadd.xlane.f32.xlu0 %v79
      %v84 = vpop.xlane.xlu0 %83
      %85 = vadd.xlane.f32.xlu0 %v80
      %v86 = vpop.xlane.xlu0 %85
      %87 = vadd.xlane.f32.xlu0 %v81
      %v88 = vpop.xlane.xlu0 %87
      %89 = vadd.xlane.f32.xlu0 %v82
      %v90 = vpop.xlane.xlu0 %89
      %v91 = vmul.f32 %v84, %v70
      %v92 = vmul.f32 %v86, %v70
      %v93 = vmul.f32 %v88, %v70
      %v94 = vmul.f32 %v90, %v70
      %v95 = vadd.f32 %v91, 1e-05
      %v96 = vadd.f32 %v92, 1e-05
      %v97 = vadd.f32 %v93, 1e-05
      %v98 = vadd.f32 %v94, 1e-05
      %v99 = vrsqrt.pop %v95
      %v100 = vrsqrt.pop %v96
      %v101 = vrsqrt.pop %v97
      %v102 = vrsqrt.pop %v98
      %v103 = vmul.f32 %v75, %v99
      %v104 = vmul.f32 %v76, %v100
      %v105 = vmul.f32 %v77, %v101
      %v106 = vmul.f32 %v78, %v102
      %v107 = vld [vmem:[%s1] sm:$0x1]
      %v109 = vlaneseq
      %v110 = vshrl.u32 %v109, 7
      %v111 = vsub.s32 0, %v110
      %v112 = vrot.slane %v107, %v111
      %v114 = vmul.f32 %v103, %v112
      %v115 = vmul.f32 %v104, %v112
      %v116 = vmul.f32 %v105, %v112
      %v117 = vmul.f32 %v106, %v112
      %v118 = vld [vmem:[%s2] sm:$0x1]
      %v120 = vlaneseq
      %v121 = vshrl.u32 %v120, 7
      %v122 = vsub.s32 0, %v121
      %v123 = vrot.slane %v118, %v122
      %v125 = vadd.f32 %v114, %v123
      %v126 = vadd.f32 %v115, %v123
      %v127 = vadd.f32 %v116, %v123
      %v128 = vadd.f32 %v117, %v123
      %v129 = vpack.c.bf16 %v126, %v125
      %v130 = vpack.c.bf16 %v128, %v127
      %131 = vst [vmem:[#allocation2] sm:$0xff] %v129
      %132 = vst [vmem:[#allocation2 + $0x8] sm:$0xff] %v130
    $region33: #{tpu_custom_call.1} parent=1 // pred_fallthru
      _
    %v133 = vld [vmem:[#allocation2] sm:$0xff]
    %v134 = vld [vmem:[#allocation2 + $0x8] sm:$0xff]
    %v135 = vld [vmem:[#allocation6] sm:$0xff]
    %v136 = vld [vmem:[#allocation6 + $0x8] sm:$0xf]
    %v137 = vld [vmem:[#allocation6 + $0xc] sm:$0xff]
    %v138 = vld [vmem:[#allocation6 + $0x14] sm:$0xf]
    %v139 = vld [vmem:[#allocation6 + $0x18] sm:$0xff]
    %v140 = vld [vmem:[#allocation6 + $0x20] sm:$0xf]
    %v141 = vld [vmem:[#allocation6 + $0x24] sm:$0xff]
    %v142 = vld [vmem:[#allocation6 + $0x2c] sm:$0xf]
    %v143 = vld [vmem:[#allocation6 + $0x30] sm:$0xff]
    %v144 = vld [vmem:[#allocation6 + $0x38] sm:$0xf]
    %v145 = vld [vmem:[#allocation6 + $0x3c] sm:$0xff]
    %v146 = vld [vmem:[#allocation6 + $0x44] sm:$0xf]
    %v147 = vld [vmem:[#allocation6 + $0x48] sm:$0xff]
    %v148 = vld [vmem:[#allocation6 + $0x50] sm:$0xf]
    %v149 = vld [vmem:[#allocation6 + $0x54] sm:$0xff]
    %v150 = vld [vmem:[#allocation6 + $0x5c] sm:$0xf]
    %v151 = vld [vmem:[#allocation6 + $0x60] sm:$0xff]
    %v152 = vld [vmem:[#allocation6 + $0x68] sm:$0xf]
    %v153 = vld [vmem:[#allocation6 + $0x6c] sm:$0xff]
    %v154 = vld [vmem:[#allocation6 + $0x74] sm:$0xf]
    %v155 = vld [vmem:[#allocation6 + $0x78] sm:$0xff]
    %v156 = vld [vmem:[#allocation6 + $0x80] sm:$0xf]
    %v157 = vld [vmem:[#allocation6 + $0x84] sm:$0xff]
    %v158 = vld [vmem:[#allocation6 + $0x8c] sm:$0xf]
    %v159 = vld [vmem:[#allocation6 + $0x90] sm:$0xff]
    %v160 = vld [vmem:[#allocation6 + $0x98] sm:$0xf]
    %v161 = vld [vmem:[#allocation6 + $0x9c] sm:$0xff]
    %v162 = vld [vmem:[#allocation6 + $0xa4] sm:$0xf]
    %v163 = vld [vmem:[#allocation6 + $0xa8] sm:$0xff]
    %v164 = vld [vmem:[#allocation6 + $0xb0] sm:$0xf]
    %v165 = vld [vmem:[#allocation6 + $0xb4] sm:$0xff]
    %v166 = vld [vmem:[#allocation6 + $0xbc] sm:$0xf]
    %v167 = vld [vmem:[%s4] sm:$0x7]
    %v169 = vlaneseq
    %v170 = vshrl.u32 %v169, 7
    %v171 = vsub.s32 0, %v170
    %v172 = vrot.slane %v167, %v171
    %v173 = vlaneseq
    %v174 = vshrl.u32 %v173, 7
    %v175 = vsub.s32 1, %v174
    %v176 = vrot.slane %v167, %v175
    %v177 = vlaneseq
    %v178 = vshrl.u32 %v177, 7
    %v179 = vsub.s32 2, %v178
    %v180 = vrot.slane %v167, %v179
    %v216 = vunpack.c.l.b16 %v135
    %v217 = vunpack.c.h.b16 %v135
    %v218 = vunpack.c.l.b16 %v136
    %v219 = vunpack.c.l.b16 %v137
    %v220 = vunpack.c.h.b16 %v137
    %v221 = vunpack.c.l.b16 %v138
    %v222 = vunpack.c.l.b16 %v139
    %v223 = vunpack.c.h.b16 %v139
    %v224 = vunpack.c.l.b16 %v140
    %v225 = vunpack.c.l.b16 %v141
    %v226 = vunpack.c.h.b16 %v141
    %v227 = vunpack.c.l.b16 %v142
    %v228 = vunpack.c.l.b16 %v143
    %v229 = vunpack.c.h.b16 %v143
    %v230 = vunpack.c.l.b16 %v144
    %v231 = vunpack.c.l.b16 %v145
    %v232 = vunpack.c.h.b16 %v145
    %v233 = vunpack.c.l.b16 %v146
    %v234 = vunpack.c.l.b16 %v147
    %v235 = vunpack.c.h.b16 %v147
    %v236 = vunpack.c.l.b16 %v148
    %v237 = vunpack.c.l.b16 %v149
    %v238 = vunpack.c.h.b16 %v149
    %v239 = vunpack.c.l.b16 %v150
    %v240 = vunpack.c.l.b16 %v151
    %v241 = vunpack.c.h.b16 %v151
    %v242 = vunpack.c.l.b16 %v152
    %v243 = vunpack.c.l.b16 %v153
    %v244 = vunpack.c.h.b16 %v153
    %v245 = vunpack.c.l.b16 %v154
    %v246 = vunpack.c.l.b16 %v155
    %v247 = vunpack.c.h.b16 %v155
    %v248 = vunpack.c.l.b16 %v156
    %v249 = vunpack.c.l.b16 %v157
    %v250 = vunpack.c.h.b16 %v157
    %v251 = vunpack.c.l.b16 %v158
    %v252 = vunpack.c.l.b16 %v159
    %v253 = vunpack.c.h.b16 %v159
    %v254 = vunpack.c.l.b16 %v160
    %v255 = vunpack.c.l.b16 %v161
    %v256 = vunpack.c.h.b16 %v161
    %v257 = vunpack.c.l.b16 %v162
    %v258 = vunpack.c.l.b16 %v163
    %v259 = vunpack.c.h.b16 %v163
    %v260 = vunpack.c.l.b16 %v164
    %v261 = vunpack.c.l.b16 %v165
    %v262 = vunpack.c.h.b16 %v165
    %v263 = vunpack.c.l.b16 %v166
    %v264 = vpack.c.b16 %v219, %v216
    %v265 = vpack.c.b16 %v220, %v217
    %v266 = vpack.c.b16 %v221, %v218
    %v267 = vpack.c.b16 %v225, %v222
    %v268 = vpack.c.b16 %v226, %v223
    %v269 = vpack.c.b16 %v227, %v224
    %v270 = vpack.c.b16 %v231, %v228
    %v271 = vpack.c.b16 %v232, %v229
    %v272 = vpack.c.b16 %v233, %v230
    %v273 = vpack.c.b16 %v237, %v234
    %v274 = vpack.c.b16 %v238, %v235
    %v275 = vpack.c.b16 %v239, %v236
    %v276 = vpack.c.b16 %v243, %v240
    %v277 = vpack.c.b16 %v244, %v241
    %v278 = vpack.c.b16 %v245, %v242
    %v279 = vpack.c.b16 %v249, %v246
    %v280 = vpack.c.b16 %v250, %v247
    %v281 = vpack.c.b16 %v251, %v248
    %v282 = vpack.c.b16 %v255, %v252
    %v283 = vpack.c.b16 %v256, %v253
    %v284 = vpack.c.b16 %v257, %v254
    %v285 = vpack.c.b16 %v261, %v258
    %v286 = vpack.c.b16 %v262, %v259
    %v287 = vpack.c.b16 %v263, %v260
    %312 = vmatprep.subr.bf16.mxu0 %v265
    %313 = vmatpush1.bf16.msra.mxu0 %v264
    %314 = vmatprep.subr.bf16.mxu0 %v268
    %315 = vmatpush1.bf16.msra.mxu0 %v267
    %316 = vmatprep.subr.bf16.mxu0 %v271
    %317 = vmatpush1.bf16.msra.mxu0 %v270
    %318 = vmatprep.subr.bf16.mxu0 %v274
    %319 = vmatpush1.bf16.msra.mxu0 %v273
    %320 = vmatprep.subr.bf16.mxu0 %v277
    %321 = vmatpush1.bf16.msra.mxu0 %v276
    %322 = vmatprep.subr.bf16.mxu0 %v280
    %323 = vmatpush1.bf16.msra.mxu0 %v279
    %324 = vmatprep.subr.bf16.mxu0 %v283
    %325 = vmatpush1.bf16.msra.mxu0 %v282
    %326 = vmatprep.subr.bf16.mxu0 %v286
    %327 = vmatpush1.bf16.msra.mxu0 %v285
    %328 = vmatprep.subr.bf16.mxu0 0
    %329 = vmatpush1.bf16.msra.mxu0 0
    %330 = vmatprep.subr.bf16.mxu0 0
    %331 = vmatpush1.bf16.msra.mxu0 0
    %332 = vmatprep.subr.bf16.mxu0 0
    %333 = vmatpush1.bf16.msra.mxu0 0
    %334 = vmatprep.subr.bf16.mxu0 0
    %335 = vmatpush1.bf16.msra.mxu0 0
    %336 = vmatprep.subr.bf16.mxu0 0
    %337 = vmatpush1.bf16.msra.mxu0 0
    %338 = vmatprep.subr.bf16.mxu0 0
    %339 = vmatpush1.bf16.msra.mxu0 0
    %340 = vmatprep.subr.bf16.mxu0 0
    %341 = vmatpush1.bf16.msra.mxu0 0
    %342 = vmatprep.subr.bf16.mxu0 0
    %343 = vmatpush1.bf16.msra.mxu0 0
    %344 = vmatprep.mubr.bf16.mxu0 0
    %345 = vmatmul.mubr.bf16.gmra.mrb[0].mxu0 %v133
    %v346 = vpop.f32.mrb[0].mxu0
    %v347 = vadd.f32 %v172, %v346
    %v348 = vpop.f32.mrb[0].mxu0
    %v349 = vadd.f32 %v176, %v348
    %v350 = vpop.f32.mrb[0].mxu0
    %v351 = vadd.f32 %v172, %v350
    %v352 = vpop.f32.mrb[0].mxu0
    %v353 = vadd.f32 %v176, %v352
    %354 = vmatprep.mubr.bf16.mxu0 0
    %355 = vmatmul.mubr.bf16.gmra.mrb[0].mxu0 %v134
    %v356 = vpop.f32.mrb[0].mxu0
    %v357 = vadd.f32 %v172, %v356
    %v358 = vpop.f32.mrb[0].mxu0
    %v359 = vadd.f32 %v176, %v358
    %v360 = vpop.f32.mrb[0].mxu0
    %v361 = vadd.f32 %v172, %v360
    %v362 = vpop.f32.mrb[0].mxu0
    %v363 = vadd.f32 %v176, %v362
    %364 = vdwg.mxu0
    %365 = vmatprep.subr.bf16.mxu0 0
    %366 = vmatpush1.bf16.msra.mxu0 %v266
    %367 = vmatprep.subr.bf16.mxu0 0
    %368 = vmatpush1.bf16.msra.mxu0 %v269
    %369 = vmatprep.subr.bf16.mxu0 0
    %370 = vmatpush1.bf16.msra.mxu0 %v272
    %371 = vmatprep.subr.bf16.mxu0 0
    %372 = vmatpush1.bf16.msra.mxu0 %v275
    %373 = vmatprep.subr.bf16.mxu0 0
    %374 = vmatpush1.bf16.msra.mxu0 %v278
    %375 = vmatprep.subr.bf16.mxu0 0
    %376 = vmatpush1.bf16.msra.mxu0 %v281
    %377 = vmatprep.subr.bf16.mxu0 0
    %378 = vmatpush1.bf16.msra.mxu0 %v284
    %379 = vmatprep.subr.bf16.mxu0 0
    %380 = vmatpush1.bf16.msra.mxu0 %v287
    %381 = vmatprep.subr.bf16.mxu0 0
    %382 = vmatpush1.bf16.msra.mxu0 0
    %383 = vmatprep.subr.bf16.mxu0 0
    %384 = vmatpush1.bf16.msra.mxu0 0
    %385 = vmatprep.subr.bf16.mxu0 0
    %386 = vmatpush1.bf16.msra.mxu0 0
    %387 = vmatprep.subr.bf16.mxu0 0
    %388 = vmatpush1.bf16.msra.mxu0 0
    %389 = vmatprep.subr.bf16.mxu0 0
    %390 = vmatpush1.bf16.msra.mxu0 0
    %391 = vmatprep.subr.bf16.mxu0 0
    %392 = vmatpush1.bf16.msra.mxu0 0
    %393 = vmatprep.subr.bf16.mxu0 0
    %394 = vmatpush1.bf16.msra.mxu0 0
    %395 = vmatprep.subr.bf16.mxu0 0
    %396 = vmatpush1.bf16.msra.mxu0 0
    %397 = vmatprep.mubr.bf16.mxu0 0
    %398 = vmatmul.mubr.bf16.gmra.mrb[0].mxu0 %v133
    %v399 = vpop.f32.mrb[0].mxu0
    %v400 = vadd.f32 %v180, %v399
    %v401 = vpop.f32.mrb[0].mxu0
    %v402 = vpop.f32.mrb[0].mxu0
    %v403 = vadd.f32 %v180, %v402
    %v404 = vpop.f32.mrb[0].mxu0
    %405 = vmatprep.mubr.bf16.mxu0 0
    %406 = vmatmul.mubr.bf16.gmra.mrb[0].mxu0 %v134
    %v407 = vpop.f32.mrb[0].mxu0
    %v408 = vadd.f32 %v180, %v407
    %v409 = vpop.f32.mrb[0].mxu0
    %v410 = vpop.f32.mrb[0].mxu0
    %v411 = vadd.f32 %v180, %v410
    %v412 = vpop.f32.mrb[0].mxu0
    %413 = vdwg.mxu0
    %v414 = vpack.c.bf16 %v351, %v347
    %v415 = vpack.c.bf16 %v353, %v349
    %v416 = vpack.c.bf16 %v403, %v400
    %v417 = vpack.c.bf16 %v361, %v357
    %v418 = vpack.c.bf16 %v363, %v359
    %v419 = vpack.c.bf16 %v411, %v408
    %v426 = vunpack.c.l.b16 %v414
    %v427 = vunpack.c.l.b16 %v415
    %v428 = vunpack.c.l.b16 %v416
    %v429 = vunpack.c.h.b16 %v414
    %v430 = vunpack.c.h.b16 %v415
    %v431 = vunpack.c.h.b16 %v416
    %v432 = vunpack.c.l.b16 %v417
    %v433 = vunpack.c.l.b16 %v418
    %v434 = vunpack.c.l.b16 %v419
    %v435 = vunpack.c.h.b16 %v417
    %v436 = vunpack.c.h.b16 %v418
    %v437 = vunpack.c.h.b16 %v419
    %v438 = vpack.c.b16 %v427, %v426
    %v439 = vpack.c.b16 %v428, %v428
    %v440 = vpack.c.b16 %v430, %v429
    %v441 = vpack.c.b16 %v431, %v431
    %v442 = vpack.c.b16 %v433, %v432
    %v443 = vpack.c.b16 %v434, %v434
    %v444 = vpack.c.b16 %v436, %v435
    %v445 = vpack.c.b16 %v437, %v437
    %454 = vst [vmem:[#allocation8] sm:$0xff] %v438
    %455 = vst [vmem:[#allocation8 + $0x8] sm:$0xf] %v439
    %456 = vst [vmem:[#allocation8 + $0xc] sm:$0xff] %v440
    %457 = vst [vmem:[#allocation8 + $0x14] sm:$0xf] %v441
    %458 = vst [vmem:[#allocation8 + $0x18] sm:$0xff] %v442
    %459 = vst [vmem:[#allocation8 + $0x20] sm:$0xf] %v443
    %460 = vst [vmem:[#allocation8 + $0x24] sm:$0xff] %v444
    %461 = vst [vmem:[#allocation8 + $0x2c] sm:$0xf] %v445
    // Predicated region
    $region34: #{tpu_custom_call.1} parent=1 // pred_check
      _
    $region35: #{tpu_custom_call.1} parent=1 // pred_check_branch
      %463 = sbr.rel (0) target = $region37
    $region36: #{tpu_custom_call.1} parent=1 // pred_region
      %s465 = ssub.s32 768, 768
      %466 = vsyncadd [#allocation5], %s465
      %s467 = sshll.u32 [#allocation8], 4
      %s468 = int_to_ptr.vmem [resolvable:$true] %s467
      %473 = dma.vmem_to_hbm [thread:$0]  %s468, 768, %s5, [#allocation5], 192, 192, 12
    $region37: #{tpu_custom_call.1} parent=1 // pred_fallthru
      _
    // Predicated region
    $region38: #{tpu_custom_call.1} parent=1 // pred_check
      _
    $region39: #{tpu_custom_call.1} parent=1 // pred_check_branch
      %475 = sbr.rel (0) target = $region41
    $region40: #{tpu_custom_call.1} parent=1 // pred_region
      %476 = dma.done [#allocation5], 768
    $region41: #{tpu_custom_call.1} parent=1 // pred_fallthru
      _
    %477 = vsyncpa [#allocation4], 1
    %478 = vsyncpa [#allocation7], 1
    %479 = vsyncpa [#allocation5], 1

</llo_original>
